<compile_context>
chip_gen: v7x
topology: tpu7x:2x2x1
jax: 0.10.0
libtpu: 0.0.40
codegen_flags: <defaults>
</compile_context>

<pallas_src>
import functools

import jax
import jax.numpy as jnp
from jax.experimental import pallas as pl
from jax.experimental.pallas import tpu as pltpu


def _stats_kernel(x_ref, mu_ref, sig_ref, *, eps):
    """Per-(sample, channel) spatial mean / std.

    x_ref  : (1, TC, HW) tile of x, lane-dense along HW.
    mu_ref : (1, TC, 1) f32
    sig_ref: (1, TC, 1) f32  (sqrt(unbiased var + eps), matching torch.var)
    """
    x = x_ref[...].astype(jnp.float32)                     # (1, TC, HW)
    hw = x.shape[2]
    mu = jnp.mean(x, axis=2, keepdims=True)                # (1, TC, 1)
    var = jnp.sum((x - mu) ** 2, axis=2, keepdims=True) / (hw - 1)
    mu_ref[...] = mu
    sig_ref[...] = jnp.sqrt(var + eps)


def _mix_kernel(x_ref, a_ref, b_ref, o_ref):
    """Fused normalize + style-mix as a per-channel affine: o = x * a + bias."""
    x = x_ref[...]                                          # (1, TC, HW)
    if o_ref.dtype == jnp.bfloat16:
        # v6e/v7x have bf16 VPU lanes: keep the blend in bf16 (halves vregs).
        # (On v5e this still compiles; Mosaic inserts the needed converts.)
        o_ref[...] = x * a_ref[...].astype(jnp.bfloat16) + b_ref[...].astype(
            jnp.bfloat16)
    else:
        o_ref[...] = (x.astype(jnp.float32) * a_ref[...]
                      + b_ref[...]).astype(o_ref.dtype)


def _pick_c_tile(C, HW, budget_bytes=4 << 20):
    """Largest channel tile whose f32 block fits a ~4 MiB per-buffer budget.

    The block's second-to-last dim must be a multiple of 8 or equal C
    (TPU (8,128) tiling rule); the last dim is always the full HW.
    With a 4 MiB block, the mix kernel's (in + out) x 2 double buffers stay
    under ~16 MiB -> inside the default scoped-VMEM limit on all chips.
    """
    if C * HW * 4 <= budget_bytes:
        return C
    for tc in range(C, 0, -1):
        if C % tc == 0 and tc % 8 == 0 and tc * HW * 4 <= budget_bytes:
            return tc
    return C  # fallback: whole-C block (correct, may exceed the budget)


def mixstyle_pallas(x, perm, lmda, *, eps=1e-6):
    """Apply MixStyle mixing given a permutation and per-sample lambdas."""
    B, C, H, W = x.shape
    HW = H * W
    x3 = x.reshape(B, C, HW)                 # lane-dense view: HW on lanes
    tc = _pick_c_tile(C, HW)
    grid = (B, C // tc)
    params = pltpu.CompilerParams(dimension_semantics=("parallel", "parallel"))

    # ---- Pass 1: per-(sample, channel) stats. One read of x from HBM. ----
    stats_kernel = functools.partial(_stats_kernel, eps=eps)
    mu, sig = pl.pallas_call(
        stats_kernel,
        out_shape=(jax.ShapeDtypeStruct((B, C, 1), jnp.float32),
                   jax.ShapeDtypeStruct((B, C, 1), jnp.float32)),
        grid_spec=pltpu.PrefetchScalarGridSpec(
            num_scalar_prefetch=0,
            grid=grid,
            in_specs=[pl.BlockSpec((1, tc, HW), lambda b, c: (b, c, 0))],
            out_specs=[pl.BlockSpec((1, tc, 1), lambda b, c: (b, c, 0)),
                       pl.BlockSpec((1, tc, 1), lambda b, c: (b, c, 0))],
        ),
        compiler_params=params,
    )(x3)

    # ---- Tiny (B, C) mixing math on the stats (negligible vs main pass). ----
    mu = mu[..., 0]                          # (B, C)
    sig = sig[..., 0]                        # (B, C)
    l = lmda.astype(jnp.float32)[:, None]    # (B, 1)
    mu2, sig2 = mu[perm], sig[perm]
    mu_mix = mu * l + mu2 * (1.0 - l)
    sig_mix = sig * l + sig2 * (1.0 - l)
    a = sig_mix / sig                        # folds (x - mu)/sig * sig_mix ...
    bias = mu_mix - mu * a                   # ... + mu_mix into x*a + bias
    a3 = a[:, :, None]                       # (B, C, 1)
    bias3 = bias[:, :, None]                 # (B, C, 1)

    # ---- Pass 2: fused per-channel affine. 1 read + 1 write of x. ----
    out = pl.pallas_call(
        _mix_kernel,
        out_shape=jax.ShapeDtypeStruct((B, C, HW), x.dtype),
        grid_spec=pltpu.PrefetchScalarGridSpec(
            num_scalar_prefetch=0,
            grid=grid,
            in_specs=[pl.BlockSpec((1, tc, HW), lambda b, c: (b, c, 0)),
                      pl.BlockSpec((1, tc, 1), lambda b, c: (b, c, 0)),
                      pl.BlockSpec((1, tc, 1), lambda b, c: (b, c, 0))],
            out_specs=pl.BlockSpec((1, tc, HW), lambda b, c: (b, c, 0)),
        ),
        compiler_params=params,
        # NOTE: input_output_aliases={0: 0} would let the output reuse x's HBM
        # buffer (safe now — no step reads another step's x); left off so the
        # caller can keep using x afterwards without an extra XLA copy.
    )(x3, a3, bias3)
    return out.reshape(B, C, H, W)


def mixstyle(x, key, *, p=0.5, alpha=0.1, eps=1e-6, training=True):
    """Full module semantics: eval / probability gate / Beta + randperm draw."""
    if not training:
        return x
    k_gate, k_beta, k_perm = jax.random.split(key, 3)
    # Host-side probability gate (mirrors `torch.rand(1).item()`).  This
    # wrapper is meant to run outside jit; under jit use lax.cond instead.
    if float(jax.random.uniform(k_gate)) > p:
        return x
    B = x.shape[0]
    lmda = jax.random.beta(k_beta, alpha, alpha, shape=(B,)).astype(jnp.float32)
    perm = jax.random.permutation(k_perm, B).astype(jnp.int32)
    return mixstyle_pallas(x, perm, lmda, eps=eps)


def _mixstyle_ref(x, perm, lmda, eps):
    """Pure-jnp reference of the mixing math (for verification)."""
    xf = x.astype(jnp.float32)
    mu = xf.mean(axis=(2, 3), keepdims=True)
    var = xf.var(axis=(2, 3), keepdims=True, ddof=1)   # unbiased, like torch
    sig = jnp.sqrt(var + eps)
    x_normed = (xf - mu) / sig
    l = lmda.reshape(-1, 1, 1, 1)
    mu2, sig2 = mu[perm], sig[perm]
    mu_mix = mu * l + mu2 * (1.0 - l)
    sig_mix = sig * l + sig2 * (1.0 - l)
    return (x_normed * sig_mix + mu_mix).astype(x.dtype)


if __name__ == "__main__":
    B, C, H, W = 2, 4, 16, 16
    eps = 1e-6
    alpha = 0.1

    key = jax.random.PRNGKey(0)
    kx, kb, kp = jax.random.split(key, 3)
    x = jax.random.normal(kx, (B, C, H, W), dtype=jnp.float32)
    lmda = jax.random.beta(kb, alpha, alpha, shape=(B,)).astype(jnp.float32)
    perm = jax.random.permutation(kp, B).astype(jnp.int32)

    out = jax.block_until_ready(mixstyle_pallas(x, perm, lmda, eps=eps))

    # Also exercise the full-module wrapper (gate forced on with p=1.0).
    _ = jax.block_until_ready(mixstyle(x, jax.random.PRNGKey(1), p=1.0))

    ref = _mixstyle_ref(x, perm, lmda, eps)
    assert out.shape == x.shape and out.dtype == x.dtype
    assert jnp.allclose(out, ref, rtol=1e-5, atol=1e-5), "mismatch vs reference"

    print("KERNEL_OK")
</pallas_src>

<mosaic_0001>
module attributes {stable_mosaic.version = 11 : i64} {
  func.func @_stats_kernel(%arg0: i32, %arg1: i32, %arg2: memref<1x4x256xf32, #tpu.memory_space<vmem>>, %arg3: memref<1x4x1xf32, #tpu.memory_space<vmem>>, %arg4: memref<1x4x1xf32, #tpu.memory_space<vmem>>) attributes {dimension_semantics = [#tpu.dimension_semantics<parallel>, #tpu.dimension_semantics<parallel>], iteration_bounds = array<i64: 2, 1>, scalar_prefetch = 0 : i64, scratch_operands = 0 : i64, tpu.core_type = #tpu.core_type<tc>, window_params = [{transform_indices = @transform_0, window_bounds = array<i64: 1, 4, 256>}, {transform_indices = @transform_1, window_bounds = array<i64: 1, 4, 1>}, {transform_indices = @transform_2, window_bounds = array<i64: 1, 4, 1>}]} {
    %c0 = arith.constant 0 : index
    %c0_0 = arith.constant 0 : index
    %c0_1 = arith.constant 0 : index
    %0 = vector.load %arg2[%c0, %c0_0, %c0_1] : memref<1x4x256xf32, #tpu.memory_space<vmem>>, vector<1x4x256xf32>
    %cst = arith.constant dense<0.000000e+00> : vector<1x4xf32>
    %1 = vector.multi_reduction <add>, %0, %cst [2] : vector<1x4x256xf32> to vector<1x4xf32>
    %2 = vector.shape_cast %1 : vector<1x4xf32> to vector<1x4x1xf32>
    %cst_2 = arith.constant 2.560000e+02 : f32
    %3 = vector.broadcast %cst_2 : f32 to vector<1x4x1xf32>
    %4 = arith.divf %2, %3 : vector<1x4x1xf32>
    %5 = vector.broadcast %4 : vector<1x4x1xf32> to vector<1x4x256xf32>
    %6 = arith.subf %0, %5 : vector<1x4x256xf32>
    %7 = arith.mulf %6, %6 : vector<1x4x256xf32>
    %cst_3 = arith.constant dense<0.000000e+00> : vector<1x4xf32>
    %8 = vector.multi_reduction <add>, %7, %cst_3 [2] : vector<1x4x256xf32> to vector<1x4xf32>
    %9 = vector.shape_cast %8 : vector<1x4xf32> to vector<1x4x1xf32>
    %cst_4 = arith.constant 2.550000e+02 : f32
    %10 = vector.broadcast %cst_4 : f32 to vector<1x4x1xf32>
    %11 = arith.divf %9, %10 : vector<1x4x1xf32>
    %c0_5 = arith.constant 0 : index
    %c0_6 = arith.constant 0 : index
    %c0_7 = arith.constant 0 : index
    %12 = vector.load %arg3[%c0_5, %c0_6, %c0_7] : memref<1x4x1xf32, #tpu.memory_space<vmem>>, vector<1x4x1xf32>
    tpu.vector_store %arg3[%c0_5, %c0_6, %c0_7], %4 {strides = array<i32>} : memref<1x4x1xf32, #tpu.memory_space<vmem>>, vector<1x4x1xf32>,
    %cst_8 = arith.constant 9.99999997E-7 : f32
    %13 = vector.broadcast %cst_8 : f32 to vector<1x4x1xf32>
    %14 = arith.addf %11, %13 : vector<1x4x1xf32>
    %15 = math.sqrt %14 : vector<1x4x1xf32>
    %c0_9 = arith.constant 0 : index
    %c0_10 = arith.constant 0 : index
    %c0_11 = arith.constant 0 : index
    %16 = vector.load %arg4[%c0_9, %c0_10, %c0_11] : memref<1x4x1xf32, #tpu.memory_space<vmem>>, vector<1x4x1xf32>
    tpu.vector_store %arg4[%c0_9, %c0_10, %c0_11], %15 {strides = array<i32>} : memref<1x4x1xf32, #tpu.memory_space<vmem>>, vector<1x4x1xf32>,
    return
  }
  func.func @transform_0(%arg0: i32, %arg1: i32) -> (i32, i32, i32) {
    %c0_i32 = arith.constant 0 : i32
    %c0_i32_0 = arith.constant 0 : i32
    return %arg0, %arg1, %c0_i32 : i32, i32, i32
  }
  func.func @transform_1(%arg0: i32, %arg1: i32) -> (i32, i32, i32) {
    %c0_i32 = arith.constant 0 : i32
    %c0_i32_0 = arith.constant 0 : i32
    return %arg0, %arg1, %c0_i32 : i32, i32, i32
  }
  func.func @transform_2(%arg0: i32, %arg1: i32) -> (i32, i32, i32) {
    %c0_i32 = arith.constant 0 : i32
    %c0_i32_0 = arith.constant 0 : i32
    return %arg0, %arg1, %c0_i32 : i32, i32, i32
  }
}

</mosaic_0001>

<llo_original>
// kernel: tpu_custom_call.1
$region0: #{tpu_custom_call.1}
  #allocation0 [shape = 'u32[]', space=smem, size = 0x4, offset = 0x4, fixed_abs, tag = 'smem constant byte address 0x4 - core index']
  #allocation1 [shape = 'u32[144,128]{1,0:T(1,128)}', space=vmem, size = 0x12000, scoped, tag = 'internal scratch']
  %s0 = inlined_call_operand.hbm [shape: f32[2,4,256], index: 0, kind: input, shape index: {}]
  %s1 = inlined_call_operand.vmem [shape: f32[2,4,1], index: 1, kind: output, shape index: {0}]
  %s2 = inlined_call_operand.vmem [shape: f32[2,4,1], index: 2, kind: output, shape index: {1}]
  %3 = xla_tuple %s1, %s2
  %s4 = sld [smem:[#allocation0]]
  $region49: #{tpu_custom_call.1} parent=0
    _
  %s6 = ssub.s32 1, %s4
  %s7 = scalar_select 0, %s6, %s4
  $region1: #{tpu_custom_call.1} parent=0
    #allocation2 [shape = 'u8[8192]{0}', space=vmem, size = 0x2000, scoped, tag = 'input window, operand 0']
    #allocation3 [shape = 's32[2]{0}', space=sflag, size = 0x8, scoped, tag = 'scoped memory for tpu_custom_call.1']
    %8 = vsyncpa [#allocation3], 0
    %s9 = scalar_lea.sflag [#allocation3], 1
    %10 = vsyncpa %s9, 0
    loop: start=0, step=1, limit=4
    $region2: #{tpu_custom_call.1} parent=1 // loop_pre_header
      _
    $region3: #{tpu_custom_call.1} parent=1 // loop_header
      %s12 = sphi 0, %s16
      %p13 = scmp.ge.s32.totalorder %s12, 4
      %s19 = sphi 0, %s31
      %s20 = sphi 0, %s27
      %s21 = sphi 0, %s19
      %s22 = sphi 0, %s20
      %s23 = sphi 0, %s21
      %s24 = sphi 0, %s22
      %s36 = sphi 0, %s38
      %s39 = sphi 0, %s36
      %s40 = sphi 0, %s39
      %s56 = sphi 0, %s40
      %s64 = sphi 0, %s66
      %s67 = sphi 0, %s64
      %s68 = sphi 0, %s67
      %s84 = sphi 0, %s68
      %s92 = sphi 0, %s94
      %s95 = sphi 0, %s92
      %s96 = sphi 0, %s95
      %s112 = sphi 0, %s96
    $region4: #{tpu_custom_call.1} parent=1 // loop_header_branch
      %15 = sbr.rel (%p13) target = $region8
    $region5: #{tpu_custom_call.1} parent=1 // loop_body
      %s17 = ssub.s32 %s12, 1
      %s18 = ssub.s32 %s12, 2
      %s25 = sadd.s32 1, %s20
      %p26 = scmp.ge.s32.totalorder %s25, 1
      %s27 = scalar_select %p26, 0, %s25
      %s28 = sadd.s32 1, %s19
      %s29 = scalar_select %p26, %s28, %s19
      %p30 = scmp.ge.s32.totalorder %s29, 2
      %s31 = scalar_select %p30, 0, %s29
      %s32 = ssub.s32 %s19, %s31
      %s33 = ssub.s32 %s20, %s27
      %s34 = sor.u32 %s32, %s33
      %p35 = scmp.eq.s32.totalorder %s34, 0
      %s37 = sadd.s32 %s36, 1
      %s38 = scalar_select %p35, %s36, %s37
      %p41 = pneg %p35
      %p42 = scmp.eq.s32.totalorder %s12, 1
      %p43 = por %p41, %p42
      %p44 = scmp.ne.s32.totalorder %s36, %s39
      %p45 = scmp.eq.s32.totalorder %s12, 0
      %p46 = por %p44, %p45
      %p47 = scmp.ne.s32.totalorder %s36, %s39
      %p48 = scmp.eq.s32.totalorder %s17, 1
      %p49 = por %p47, %p48
      %p50 = scmp.ne.s32.totalorder %s39, %s40
      %p51 = scmp.eq.s32.totalorder %s17, 0
      %p52 = por %p50, %p51
      %p53 = scmp.ne.s32.totalorder %s39, %s40
      %p54 = scmp.eq.s32.totalorder %s18, 1
      %p55 = por %p53, %p54
      %p57 = scmp.ne.s32.totalorder %s40, %s56
      %p58 = scmp.eq.s32.totalorder %s18, 0
      %p59 = por %p57, %p58
      %s60 = ssub.s32 %s19, %s31
      %s61 = ssub.s32 %s20, %s27
      %s62 = sor.u32 %s60, %s61
      %p63 = scmp.eq.s32.totalorder %s62, 0
      %s65 = sadd.s32 %s64, 1
      %s66 = scalar_select %p63, %s64, %s65
      %p69 = pneg %p63
      %p70 = scmp.eq.s32.totalorder %s12, 1
      %p71 = por %p69, %p70
      %p72 = scmp.ne.s32.totalorder %s64, %s67
      %p73 = scmp.eq.s32.totalorder %s12, 0
      %p74 = por %p72, %p73
      %p75 = scmp.ne.s32.totalorder %s64, %s67
      %p76 = scmp.eq.s32.totalorder %s17, 1
      %p77 = por %p75, %p76
      %p78 = scmp.ne.s32.totalorder %s67, %s68
      %p79 = scmp.eq.s32.totalorder %s17, 0
      %p80 = por %p78, %p79
      %p81 = scmp.ne.s32.totalorder %s67, %s68
      %p82 = scmp.eq.s32.totalorder %s18, 1
      %p83 = por %p81, %p82
      %p85 = scmp.ne.s32.totalorder %s68, %s84
      %p86 = scmp.eq.s32.totalorder %s18, 0
      %p87 = por %p85, %p86
      %s88 = ssub.s32 %s19, %s31
      %s89 = ssub.s32 %s20, %s27
      %s90 = sor.u32 %s88, %s89
      %p91 = scmp.eq.s32.totalorder %s90, 0
      %s93 = sadd.s32 %s92, 1
      %s94 = scalar_select %p91, %s92, %s93
      %p97 = pneg %p91
      %p98 = scmp.eq.s32.totalorder %s12, 1
      %p99 = por %p97, %p98
      %p100 = scmp.ne.s32.totalorder %s92, %s95
      %p101 = scmp.eq.s32.totalorder %s12, 0
      %p102 = por %p100, %p101
      %p103 = scmp.ne.s32.totalorder %s92, %s95
      %p104 = scmp.eq.s32.totalorder %s17, 1
      %p105 = por %p103, %p104
      %p106 = scmp.ne.s32.totalorder %s95, %s96
      %p107 = scmp.eq.s32.totalorder %s17, 0
      %p108 = por %p106, %p107
      %p109 = scmp.ne.s32.totalorder %s95, %s96
      %p110 = scmp.eq.s32.totalorder %s18, 1
      %p111 = por %p109, %p110
      %p113 = scmp.ne.s32.totalorder %s96, %s112
      %p114 = scmp.eq.s32.totalorder %s18, 0
      %p115 = por %p113, %p114
      %p116 = scmp.le.s32.totalorder 1, %s12
      %p117 = scmp.lt.s32.totalorder %s12, 3
      %p118 = pnand %p116, %p117
      %p119 = pneg %p118
      // Predicated region
      $region9: #{tpu_custom_call.1} parent=5 // pred_check
        _
      $region10: #{tpu_custom_call.1} parent=5 // pred_check_branch
        %121 = sbr.rel (%p118) target = $region12
      $region11: #{tpu_custom_call.1} parent=5 // pred_region
        %s122 = ssub.s32 %s12, 1
      $region12: #{tpu_custom_call.1} parent=5 // pred_fallthru
        _
      %p123 = scmp.lt.s32.totalorder %s12, 2
      // Predicated region
      $region13: #{tpu_custom_call.1} parent=5 // pred_check
        %p124 = pneg %p123
      $region14: #{tpu_custom_call.1} parent=5 // pred_check_branch
        %126 = sbr.rel (%p124) target = $region16
      $region15: #{tpu_custom_call.1} parent=5 // pred_region
        // Predicated region
        $region17: #{tpu_custom_call.1} parent=15 // pred_check
          %p127 = pneg %p46
        $region18: #{tpu_custom_call.1} parent=15 // pred_check_branch
          %129 = sbr.rel (%p127) target = $region20
        $region19: #{tpu_custom_call.1} parent=15 // pred_region
          %s130 = sand.u32 %s36, 1
          %s131 = scalar_lea.sflag [#allocation3], %s130
          %s132 = sand.u32 %s36, 1
          %s133 = smul.addr %s132, 8
          %s134 = scalar_lea.vmem [#allocation2], %s133
          %s136 = ssub.s32 128, 128
          %137 = vsyncadd %s131, %s136
          %s138 = smul.addr %s20, 2
          %s139 = smul.addr %s19, 2
          %s140 = sadd.s32 %s138, %s139
          %s141 = smul.addr %s140, 64
          %s142 = scalar_lea.hbm %s0, %s141
          %s144 = sshll.u32 %s134, 4
          %s145 = int_to_ptr.vmem [resolvable:$true] %s144
          %147 = dma.hbm_to_vmem [thread:$0]  %s142, 128, %s145, %s131
        $region20: #{tpu_custom_call.1} parent=15 // pred_fallthru
          _
      $region16: #{tpu_custom_call.1} parent=5 // pred_fallthru
        _
      %p148 = scmp.le.s32.totalorder 1, %s12
      %p149 = scmp.lt.s32.totalorder %s12, 3
      %p150 = pnand %p148, %p149
      %p151 = pneg %p150
      // Predicated region
      $region21: #{tpu_custom_call.1} parent=5 // pred_check
        _
      $region22: #{tpu_custom_call.1} parent=5 // pred_check_branch
        %153 = sbr.rel (%p150) target = $region24
      $region23: #{tpu_custom_call.1} parent=5 // pred_region
        %s154 = ssub.s32 %s12, 1
        %s155 = sand.u32 %s39, 1
        %s156 = scalar_lea.sflag [#allocation3], %s155
        %s157 = sand.u32 %s39, 1
        %s158 = smul.addr %s157, 8
        %s159 = scalar_lea.vmem [#allocation2], %s158
        // Predicated region
        $region25: #{tpu_custom_call.1} parent=23 // pred_check
          %p160 = pneg %p52
        $region26: #{tpu_custom_call.1} parent=23 // pred_check_branch
          %162 = sbr.rel (%p160) target = $region28
        $region27: #{tpu_custom_call.1} parent=23 // pred_region
          %163 = dma.done %s156, 128
        $region28: #{tpu_custom_call.1} parent=23 // pred_fallthru
          _
        %s164 = sand.u32 %s39, 1
        %s165 = scalar_lea.sflag [#allocation3], %s164
        %s166 = sand.u32 %s39, 1
        %s167 = smul.addr %s166, 8
        %s168 = scalar_lea.vmem [#allocation2], %s167
        %p169 = pneg %p52
        %p170 = pneg %p49
        %p171 = pneg %p80
        %p172 = pneg %p77
        %p173 = scmp.lt.s32.totalorder %s21, 1
        %s174 = scalar_select %p173, %s21, 1
        %p175 = scmp.lt.s32.totalorder %s22, 0
        %s176 = scalar_select %p175, %s22, 0
        %s177 = sadd.s32 %s176, %s174
        %s178 = smul.addr %s177, 4
        %s179 = scalar_lea.vmem %s1, %s178
        %p180 = pneg %p108
        %p181 = pneg %p105
        %p182 = scmp.lt.s32.totalorder %s21, 1
        %s183 = scalar_select %p182, %s21, 1
        %p184 = scmp.lt.s32.totalorder %s22, 0
        %s185 = scalar_select %p184, %s22, 0
        %s186 = sadd.s32 %s185, %s183
        %s187 = smul.addr %s186, 4
        %s188 = scalar_lea.vmem %s2, %s187
        %p189 = scmp.lt.s32.totalorder %s21, 1
        %s190 = scalar_select %p189, %s21, 1
        %p191 = scmp.lt.s32.totalorder %s22, 0
        %s192 = scalar_select %p191, %s22, 0
        %s193 = sadd.s32 %s192, %s190
        %s194 = smul.addr %s193, 4
        %s195 = scalar_lea.vmem %s1, %s194
        %p196 = scmp.lt.s32.totalorder %s21, 1
        %s197 = scalar_select %p196, %s21, 1
        %p198 = scmp.lt.s32.totalorder %s22, 0
        %s199 = scalar_select %p198, %s22, 0
        %s200 = sadd.s32 %s199, %s197
        %s201 = smul.addr %s200, 4
        %s202 = scalar_lea.vmem %s2, %s201
        %v203 = vld [vmem:[%s159] sm:$0xff]
        %v205 = vcombine.high %v203, %v203
        %vm207 = vcmask 1043456
        %v208 = vsel %vm207, %v203, 0.0
        %v209 = vsel %vm207, %v205, 0.0
        %v210 = vadd.f32 %v208, %v209
        %211 = vadd.xlane.f32.xlu0 %v210
        %v212 = vpop.xlane.xlu0 %211
        %v213 = vrcp.pop 256.0
        %v214 = vmul.f32 %v212, %v213
        %v217 = vunpack.c.l.s4 839922192
        %v218 = vunpack.c.0.s8 %v217
        %v219 = vlaneseq
        %v220 = vshrl.u32 %v219, 7
        %v221 = vsub.s32 %v218, %v220
        %v222 = vrot.slane %v214, %v221
        %v224 = vsub.f32 %v203, %v222
        %v225 = vmul.f32 %v224, %v224
        %v227 = vcombine.high %v225, %v225
        %v229 = vsel %vm207, %v225, 0.0
        %v230 = vsel %vm207, %v227, 0.0
        %v231 = vadd.f32 %v229, %v230
        %232 = vadd.xlane.f32.xlu0 %v231
        %v233 = vpop.xlane.xlu0 %232
        %v234 = vrcp.pop 255.0
        %v235 = vmul.f32 %v233, %v234
        %vm236 = vcmask 3072
        %237 = vst.msk [vmem:[%s195] sm:$0xf] %vm236, %v214
        %v238 = vadd.f32 %v235, 1e-06
        %v239 = vrsqrt.pop %v238
        %v240 = vmul.f32 %v238, %v239
        %vm241 = vcmp.eq.f32.partialorder %v238, inf
        %v242 = vsel %vm241, %v238, %v240
        %vm243 = vcmp.eq.f32.partialorder %v238, 0.0
        %v244 = vand.u32 %v238, 2147483648
        %v245 = vsel %vm243, %v244, %v242
        %246 = vst.msk [vmem:[%s202] sm:$0xf] %vm236, %v245
        %p247 = scmp.lt.s32.totalorder %s21, 1
        %s248 = scalar_select %p247, %s21, 1
        %p249 = scmp.lt.s32.totalorder %s22, 0
        %s250 = scalar_select %p249, %s22, 0
        %s251 = sadd.s32 %s250, %s248
        %s252 = smul.addr %s251, 4
        %s253 = scalar_lea.vmem %s1, %s252
        %p254 = scmp.lt.s32.totalorder %s21, 1
        %s255 = scalar_select %p254, %s21, 1
        %p256 = scmp.lt.s32.totalorder %s22, 0
        %s257 = scalar_select %p256, %s22, 0
        %s258 = sadd.s32 %s257, %s255
        %s259 = smul.addr %s258, 4
        %s260 = scalar_lea.vmem %s2, %s259
        // Predicated region
        $region29: #{tpu_custom_call.1} parent=23 // pred_check
          %p261 = pneg %p77
        $region30: #{tpu_custom_call.1} parent=23 // pred_check_branch
          %263 = sbr.rel (%p261) target = $region32
        $region31: #{tpu_custom_call.1} parent=23 // pred_region
          _
        $region32: #{tpu_custom_call.1} parent=23 // pred_fallthru
          _
        // Predicated region
        $region33: #{tpu_custom_call.1} parent=23 // pred_check
          %p264 = pneg %p105
        $region34: #{tpu_custom_call.1} parent=23 // pred_check_branch
          %266 = sbr.rel (%p264) target = $region36
        $region35: #{tpu_custom_call.1} parent=23 // pred_region
          _
        $region36: #{tpu_custom_call.1} parent=23 // pred_fallthru
          _
      $region24: #{tpu_custom_call.1} parent=5 // pred_fallthru
        _
      %p267 = scmp.le.s32.totalorder 2, %s12
      // Predicated region
      $region37: #{tpu_custom_call.1} parent=5 // pred_check
        %p268 = pneg %p267
      $region38: #{tpu_custom_call.1} parent=5 // pred_check_branch
        %270 = sbr.rel (%p268) target = $region40
      $region39: #{tpu_custom_call.1} parent=5 // pred_region
        %s271 = ssub.s32 %s12, 2
        // Predicated region
        $region41: #{tpu_custom_call.1} parent=39 // pred_check
          %p272 = pneg %p83
        $region42: #{tpu_custom_call.1} parent=39 // pred_check_branch
          %274 = sbr.rel (%p272) target = $region44
        $region43: #{tpu_custom_call.1} parent=39 // pred_region
          %p275 = scmp.lt.s32.totalorder %s23, 1
          %s276 = scalar_select %p275, %s23, 1
          %p277 = scmp.lt.s32.totalorder %s24, 0
          %s278 = scalar_select %p277, %s24, 0
          %s279 = sadd.s32 %s278, %s276
          %s280 = smul.addr %s279, 4
          %s281 = scalar_lea.vmem %s1, %s280
        $region44: #{tpu_custom_call.1} parent=39 // pred_fallthru
          _
        // Predicated region
        $region45: #{tpu_custom_call.1} parent=39 // pred_check
          %p282 = pneg %p111
        $region46: #{tpu_custom_call.1} parent=39 // pred_check_branch
          %284 = sbr.rel (%p282) target = $region48
        $region47: #{tpu_custom_call.1} parent=39 // pred_region
          %p285 = scmp.lt.s32.totalorder %s23, 1
          %s286 = scalar_select %p285, %s23, 1
          %p287 = scmp.lt.s32.totalorder %s24, 0
          %s288 = scalar_select %p287, %s24, 0
          %s289 = sadd.s32 %s288, %s286
          %s290 = smul.addr %s289, 4
          %s291 = scalar_lea.vmem %s2, %s290
        $region48: #{tpu_custom_call.1} parent=39 // pred_fallthru
          _
      $region40: #{tpu_custom_call.1} parent=5 // pred_fallthru
        _
    $region6: #{tpu_custom_call.1} parent=1 // loop_footer
      %s16 = sadd.s32 1, %s12
    $region7: #{tpu_custom_call.1} parent=1 // loop_footer_branch
      %11 = sbr.rel target = $region3
    $region8: #{tpu_custom_call.1} parent=1 // loop_exit
      _
    %292 = vsyncpa [#allocation3], 1
    %s293 = scalar_lea.sflag [#allocation3], 1
    %294 = vsyncpa %s293, 1

</llo_original>
